<compile_context>
chip_gen: v5e
topology: v5e:2x2
jax: 0.10.0
libtpu: 0.0.40
codegen_flags: <defaults>
</compile_context>

<pallas_src>
import functools

import jax
import jax.numpy as jnp
from jax.experimental import pallas as pl
from jax.experimental.pallas import tpu as pltpu


def _round_up(v, m):
    return (v + m - 1) // m * m


def _resblock_kernel(x_ref, w1_ref, w2_ref, wexp_ref, bexp_ref,
                     gamma_ref, beta_ref, out_ref, pad_ref,
                     *, n, length, cp, taps, dilation, left, eps):
    rows = n * length
    inv_rows = 1.0 / rows

    def im2col():
        # Concatenate the `taps` shifted views once -> single deep-contraction matmul.
        views = [
            pad_ref[:, left - dilation + k * dilation:
                       left - dilation + k * dilation + length, :]
            for k in range(taps)
        ]
        return jnp.concatenate(views, axis=-1).reshape(rows, taps * cp)

    def bn_scale_shift(h):
        # One sweep over rows: sum + sum-of-squares -> folded per-channel scale/shift.
        s = jnp.sum(h, axis=0, keepdims=True)
        sq = jnp.sum(h * h, axis=0, keepdims=True)
        mean = s * inv_rows
        var = jnp.maximum(sq * inv_rows - mean * mean, 0.0)   # clamp cancellation, keep f32
        scale = gamma_ref[...] * jax.lax.rsqrt(var + eps)     # EUP rsqrt
        shift = beta_ref[...] - mean * scale
        return scale, shift

    # Zero ONLY the halo rows, once: the interior is fully overwritten before
    # each conv and the halo stays zero for conv2.
    zero_halo = jnp.zeros((n, dilation, cp), pad_ref.dtype)
    pad_ref[:, left - dilation:left, :] = zero_halo
    pad_ref[:, left + length:left + length + dilation, :] = zero_halo

    x = x_ref[...]                                            # (rows, cp) f32 residual

    # conv1 (bias elided: exactly cancelled by BN mean subtraction)
    pad_ref[:, left:left + length, :] = x.reshape(n, length, cp).astype(pad_ref.dtype)
    h1 = jnp.dot(im2col(), w1_ref[...], preferred_element_type=jnp.float32)
    s1, t1 = bn_scale_shift(h1)
    a1 = jnp.maximum(h1 * s1 + t1, 0.0)                       # ReLU(BN(conv1(x)))

    # conv2 (bias elided)
    pad_ref[:, left:left + length, :] = a1.reshape(n, length, cp).astype(pad_ref.dtype)
    h2 = jnp.dot(im2col(), w2_ref[...], preferred_element_type=jnp.float32)
    s2, t2 = bn_scale_shift(h2)
    a2 = jnp.maximum(h2 * s2 + t2 + x, 0.0)                   # ReLU(BN(conv2) + residual)

    # channel_expansion: 1x1 conv == lane-dense matmul (rows, Cp) @ (Cp, C2p) + bias
    y = jnp.dot(a2.astype(wexp_ref.dtype), wexp_ref[...],
                preferred_element_type=jnp.float32)
    out_ref[...] = (y + bexp_ref[...]).astype(out_ref.dtype)


def resblock_1d_forward(x_ncl, params, *, kernel_size=3, stride=1,
                        dilation=2, idx=1):
    """x_ncl: (N, C_in, L) float32 (PyTorch NCW). Returns ((N, 2*C_out, L), C_out)."""
    assert stride == 1, "reference block uses stride=1"
    n, c_in, length = x_ncl.shape
    dil = idx * dilation                      # self.dilation (also used as padding)

    w1, b1, w2, b2, wexp, bexp, gamma, beta = params
    c_out = w1.shape[0]
    assert c_in == c_out, "residual add requires in_channels == out_channels"
    del b1, b2  # exactly cancelled by train-mode BatchNorm mean subtraction

    cp = _round_up(c_in, 128)                 # lane-dense hidden channels
    c2p = _round_up(2 * c_out, 128)           # lane-dense expansion channels
    left = _round_up(dil, 16)                 # bf16-sublane-aligned interior / center tap

    # --- glue: layout conversion + weight repacking (plain JAX, outside the kernel)
    x_nlc = jnp.transpose(x_ncl, (0, 2, 1)).astype(jnp.float32)
    x2 = jnp.pad(x_nlc, ((0, 0), (0, 0), (0, cp - c_in))).reshape(n * length, cp)

    def pack_conv(w):
        # torch (Cout, Cin, K) -> im2col-stacked (K*cp, cp) bf16, zero-padded lanes
        cout, cin, k = w.shape
        wk = jnp.zeros((k, cp, cp), jnp.float32)
        wk = wk.at[:, :cin, :cout].set(jnp.transpose(w, (2, 1, 0)))
        return wk.reshape(k * cp, cp).astype(jnp.bfloat16)

    w1p = pack_conv(w1)
    w2p = pack_conv(w2)
    wexp_p = (jnp.zeros((cp, c2p), jnp.float32)
              .at[:c_out, :2 * c_out].set(jnp.transpose(wexp[:, :, 0], (1, 0)))
              .astype(jnp.bfloat16))
    bexp_p = jnp.zeros((1, c2p), jnp.float32).at[0, :2 * c_out].set(bexp)
    gamma_p = jnp.zeros((1, cp), jnp.float32).at[0, :c_out].set(gamma)
    beta_p = jnp.zeros((1, cp), jnp.float32).at[0, :c_out].set(beta)

    kernel = functools.partial(
        _resblock_kernel, n=n, length=length, cp=cp,
        taps=kernel_size, dilation=dil, left=left, eps=1e-5)

    y2 = pl.pallas_call(
        kernel,
        out_shape=jax.ShapeDtypeStruct((n * length, c2p), jnp.float32),
        in_specs=[pl.BlockSpec(memory_space=pltpu.MemorySpace.VMEM)] * 7,
        out_specs=pl.BlockSpec(memory_space=pltpu.MemorySpace.VMEM),
        scratch_shapes=[pltpu.VMEM((n, left + length + dil, cp), jnp.bfloat16)],
        compiler_params=pltpu.CompilerParams(vmem_limit_bytes=32 * 1024 * 1024),
    )(x2, w1p, w2p, wexp_p, bexp_p, gamma_p, beta_p)

    y = jnp.transpose(y2[:, :2 * c_out].reshape(n, length, 2 * c_out), (0, 2, 1))
    return y, c_out


def init_params(key, in_channels, out_channels, kernel_size=3):
    """Deterministic synthetic params matching the module's __init__ shapes."""
    ks = jax.random.split(key, 6)
    w1 = jax.random.normal(ks[0], (out_channels, in_channels, kernel_size),
                           jnp.float32) / jnp.sqrt(in_channels * kernel_size)
    b1 = 0.1 * jax.random.normal(ks[1], (out_channels,), jnp.float32)
    w2 = jax.random.normal(ks[2], (out_channels, out_channels, kernel_size),
                           jnp.float32) / jnp.sqrt(out_channels * kernel_size)
    b2 = 0.1 * jax.random.normal(ks[3], (out_channels,), jnp.float32)
    wexp = jax.random.normal(ks[4], (2 * out_channels, out_channels, 1),
                             jnp.float32) / jnp.sqrt(out_channels)
    bexp = 0.1 * jax.random.normal(ks[5], (2 * out_channels,), jnp.float32)
    gamma = jnp.ones((out_channels,), jnp.float32)   # BatchNorm1d default weight
    beta = jnp.zeros((out_channels,), jnp.float32)   # BatchNorm1d default bias
    return (w1, b1, w2, b2, wexp, bexp, gamma, beta)


if __name__ == "__main__":
    key = jax.random.PRNGKey(0)
    kx, kp = jax.random.split(key)
    N, C, L = 2, 4, 16          # in_channels == out_channels (residual add)
    x = jax.random.normal(kx, (N, C, L), jnp.float32)
    params = init_params(kp, C, C, kernel_size=3)

    y, channel_n = resblock_1d_forward(x, params, kernel_size=3, stride=1,
                                       dilation=2, idx=1)
    y = jax.block_until_ready(y)
    assert y.shape == (N, 2 * C, L), y.shape
    assert channel_n == C
    print("KERNEL_OK")
</pallas_src>

<mosaic_0001>
module attributes {stable_mosaic.version = 11 : i64} {
  func.func @_resblock_kernel(%arg0: memref<32x128xf32, #tpu.memory_space<vmem>>, %arg1: memref<384x128xbf16, #tpu.memory_space<vmem>>, %arg2: memref<384x128xbf16, #tpu.memory_space<vmem>>, %arg3: memref<128x128xbf16, #tpu.memory_space<vmem>>, %arg4: memref<1x128xf32, #tpu.memory_space<vmem>>, %arg5: memref<1x128xf32, #tpu.memory_space<vmem>>, %arg6: memref<1x128xf32, #tpu.memory_space<vmem>>, %arg7: memref<32x128xf32, #tpu.memory_space<vmem>>, %arg8: memref<2x34x128xbf16, #tpu.memory_space<vmem>>) attributes {dimension_semantics = [], scalar_prefetch = 0 : i64, scratch_operands = 1 : i64, tpu.core_type = #tpu.core_type<tc>} {
    %cst = arith.constant 0.000000e+00 : bf16
    %0 = vector.broadcast %cst : bf16 to vector<2x2x128xbf16>
    %c0 = arith.constant 0 : index
    %c14 = arith.constant 14 : index
    %c0_0 = arith.constant 0 : index
    %1 = vector.load %arg8[%c0, %c14, %c0_0] : memref<2x34x128xbf16, #tpu.memory_space<vmem>>, vector<2x2x128xbf16>
    tpu.vector_store %arg8[%c0, %c14, %c0_0], %0 {strides = array<i32>} : memref<2x34x128xbf16, #tpu.memory_space<vmem>>, vector<2x2x128xbf16>,
    %c0_1 = arith.constant 0 : index
    %c32 = arith.constant 32 : index
    %c0_2 = arith.constant 0 : index
    %2 = vector.load %arg8[%c0_1, %c32, %c0_2] : memref<2x34x128xbf16, #tpu.memory_space<vmem>>, vector<2x2x128xbf16>
    tpu.vector_store %arg8[%c0_1, %c32, %c0_2], %0 {strides = array<i32>} : memref<2x34x128xbf16, #tpu.memory_space<vmem>>, vector<2x2x128xbf16>,
    %c0_3 = arith.constant 0 : index
    %c0_4 = arith.constant 0 : index
    %3 = vector.load %arg0[%c0_3, %c0_4] : memref<32x128xf32, #tpu.memory_space<vmem>>, vector<32x128xf32>
    %4 = vector.shape_cast %3 : vector<32x128xf32> to vector<2x16x128xf32>
    %5 = arith.truncf %4 : vector<2x16x128xf32> to vector<2x16x128xbf16>
    %c0_5 = arith.constant 0 : index
    %c16 = arith.constant 16 : index
    %c0_6 = arith.constant 0 : index
    %6 = vector.load %arg8[%c0_5, %c16, %c0_6] : memref<2x34x128xbf16, #tpu.memory_space<vmem>>, vector<2x16x128xbf16>
    tpu.vector_store %arg8[%c0_5, %c16, %c0_6], %5 {strides = array<i32>} : memref<2x34x128xbf16, #tpu.memory_space<vmem>>, vector<2x16x128xbf16>,
    %c0_7 = arith.constant 0 : index
    %c14_8 = arith.constant 14 : index
    %c0_9 = arith.constant 0 : index
    %7 = vector.load %arg8[%c0_7, %c14_8, %c0_9] : memref<2x34x128xbf16, #tpu.memory_space<vmem>>, vector<2x16x128xbf16>
    %c0_10 = arith.constant 0 : index
    %c16_11 = arith.constant 16 : index
    %c0_12 = arith.constant 0 : index
    %8 = vector.load %arg8[%c0_10, %c16_11, %c0_12] : memref<2x34x128xbf16, #tpu.memory_space<vmem>>, vector<2x16x128xbf16>
    %c0_13 = arith.constant 0 : index
    %c18 = arith.constant 18 : index
    %c0_14 = arith.constant 0 : index
    %9 = vector.load %arg8[%c0_13, %c18, %c0_14] : memref<2x34x128xbf16, #tpu.memory_space<vmem>>, vector<2x16x128xbf16>
    %10 = tpu.concatenate %7, %8, %9 in 2 : vector<2x16x128xbf16>, vector<2x16x128xbf16>, vector<2x16x128xbf16> -> vector<2x16x384xbf16>
    %11 = vector.shape_cast %10 : vector<2x16x384xbf16> to vector<32x384xbf16>
    %c0_15 = arith.constant 0 : index
    %c0_16 = arith.constant 0 : index
    %12 = vector.load %arg1[%c0_15, %c0_16] : memref<384x128xbf16, #tpu.memory_space<vmem>>, vector<384x128xbf16>
    %cst_17 = arith.constant dense<0.000000e+00> : vector<32x128xf32>
    %13 = tpu.matmul %11, %12, %cst_17 {dimension_numbers = #tpu.dot_dimension_numbers<[1], [0], [0], [1], [0, 0, 1, 1], [], []>} : vector<32x384xbf16>, vector<384x128xbf16>, vector<32x128xf32> -> vector<32x128xf32>
    %cst_18 = arith.constant dense<0.000000e+00> : vector<128xf32>
    %14 = vector.multi_reduction <add>, %13, %cst_18 [0] : vector<32x128xf32> to vector<128xf32>
    %15 = vector.shape_cast %14 : vector<128xf32> to vector<1x128xf32>
    %16 = arith.mulf %13, %13 : vector<32x128xf32>
    %cst_19 = arith.constant dense<0.000000e+00> : vector<128xf32>
    %17 = vector.multi_reduction <add>, %16, %cst_19 [0] : vector<32x128xf32> to vector<128xf32>
    %18 = vector.shape_cast %17 : vector<128xf32> to vector<1x128xf32>
    %cst_20 = arith.constant 3.125000e-02 : f32
    %19 = vector.broadcast %cst_20 : f32 to vector<1x128xf32>
    %20 = arith.mulf %15, %19 : vector<1x128xf32>
    %cst_21 = arith.constant 3.125000e-02 : f32
    %21 = vector.broadcast %cst_21 : f32 to vector<1x128xf32>
    %22 = arith.mulf %18, %21 : vector<1x128xf32>
    %23 = arith.mulf %20, %20 : vector<1x128xf32>
    %24 = arith.subf %22, %23 : vector<1x128xf32>
    %cst_22 = arith.constant 0.000000e+00 : f32
    %25 = vector.broadcast %cst_22 : f32 to vector<1x128xf32>
    %26 = arith.maximumf %24, %25 : vector<1x128xf32>
    %c0_23 = arith.constant 0 : index
    %c0_24 = arith.constant 0 : index
    %27 = vector.load %arg5[%c0_23, %c0_24] : memref<1x128xf32, #tpu.memory_space<vmem>>, vector<1x128xf32>
    %cst_25 = arith.constant 9.99999974E-6 : f32
    %28 = vector.broadcast %cst_25 : f32 to vector<1x128xf32>
    %29 = arith.addf %26, %28 : vector<1x128xf32>
    %30 = math.rsqrt %29 : vector<1x128xf32>
    %31 = arith.mulf %27, %30 : vector<1x128xf32>
    %c0_26 = arith.constant 0 : index
    %c0_27 = arith.constant 0 : index
    %32 = vector.load %arg6[%c0_26, %c0_27] : memref<1x128xf32, #tpu.memory_space<vmem>>, vector<1x128xf32>
    %33 = arith.mulf %20, %31 : vector<1x128xf32>
    %34 = arith.subf %32, %33 : vector<1x128xf32>
    %35 = vector.broadcast %31 : vector<1x128xf32> to vector<32x128xf32>
    %36 = arith.mulf %13, %35 : vector<32x128xf32>
    %37 = vector.broadcast %34 : vector<1x128xf32> to vector<32x128xf32>
    %38 = arith.addf %36, %37 : vector<32x128xf32>
    %cst_28 = arith.constant 0.000000e+00 : f32
    %39 = vector.broadcast %cst_28 : f32 to vector<32x128xf32>
    %40 = arith.maximumf %38, %39 : vector<32x128xf32>
    %41 = vector.shape_cast %40 : vector<32x128xf32> to vector<2x16x128xf32>
    %42 = arith.truncf %41 : vector<2x16x128xf32> to vector<2x16x128xbf16>
    %c0_29 = arith.constant 0 : index
    %c16_30 = arith.constant 16 : index
    %c0_31 = arith.constant 0 : index
    %43 = vector.load %arg8[%c0_29, %c16_30, %c0_31] : memref<2x34x128xbf16, #tpu.memory_space<vmem>>, vector<2x16x128xbf16>
    tpu.vector_store %arg8[%c0_29, %c16_30, %c0_31], %42 {strides = array<i32>} : memref<2x34x128xbf16, #tpu.memory_space<vmem>>, vector<2x16x128xbf16>,
    %c0_32 = arith.constant 0 : index
    %c14_33 = arith.constant 14 : index
    %c0_34 = arith.constant 0 : index
    %44 = vector.load %arg8[%c0_32, %c14_33, %c0_34] : memref<2x34x128xbf16, #tpu.memory_space<vmem>>, vector<2x16x128xbf16>
    %c0_35 = arith.constant 0 : index
    %c16_36 = arith.constant 16 : index
    %c0_37 = arith.constant 0 : index
    %45 = vector.load %arg8[%c0_35, %c16_36, %c0_37] : memref<2x34x128xbf16, #tpu.memory_space<vmem>>, vector<2x16x128xbf16>
    %c0_38 = arith.constant 0 : index
    %c18_39 = arith.constant 18 : index
    %c0_40 = arith.constant 0 : index
    %46 = vector.load %arg8[%c0_38, %c18_39, %c0_40] : memref<2x34x128xbf16, #tpu.memory_space<vmem>>, vector<2x16x128xbf16>
    %47 = tpu.concatenate %44, %45, %46 in 2 : vector<2x16x128xbf16>, vector<2x16x128xbf16>, vector<2x16x128xbf16> -> vector<2x16x384xbf16>
    %48 = vector.shape_cast %47 : vector<2x16x384xbf16> to vector<32x384xbf16>
    %c0_41 = arith.constant 0 : index
    %c0_42 = arith.constant 0 : index
    %49 = vector.load %arg2[%c0_41, %c0_42] : memref<384x128xbf16, #tpu.memory_space<vmem>>, vector<384x128xbf16>
    %cst_43 = arith.constant dense<0.000000e+00> : vector<32x128xf32>
    %50 = tpu.matmul %48, %49, %cst_43 {dimension_numbers = #tpu.dot_dimension_numbers<[1], [0], [0], [1], [0, 0, 1, 1], [], []>} : vector<32x384xbf16>, vector<384x128xbf16>, vector<32x128xf32> -> vector<32x128xf32>
    %cst_44 = arith.constant dense<0.000000e+00> : vector<128xf32>
    %51 = vector.multi_reduction <add>, %50, %cst_44 [0] : vector<32x128xf32> to vector<128xf32>
    %52 = vector.shape_cast %51 : vector<128xf32> to vector<1x128xf32>
    %53 = arith.mulf %50, %50 : vector<32x128xf32>
    %cst_45 = arith.constant dense<0.000000e+00> : vector<128xf32>
    %54 = vector.multi_reduction <add>, %53, %cst_45 [0] : vector<32x128xf32> to vector<128xf32>
    %55 = vector.shape_cast %54 : vector<128xf32> to vector<1x128xf32>
    %cst_46 = arith.constant 3.125000e-02 : f32
    %56 = vector.broadcast %cst_46 : f32 to vector<1x128xf32>
    %57 = arith.mulf %52, %56 : vector<1x128xf32>
    %cst_47 = arith.constant 3.125000e-02 : f32
    %58 = vector.broadcast %cst_47 : f32 to vector<1x128xf32>
    %59 = arith.mulf %55, %58 : vector<1x128xf32>
    %60 = arith.mulf %57, %57 : vector<1x128xf32>
    %61 = arith.subf %59, %60 : vector<1x128xf32>
    %cst_48 = arith.constant 0.000000e+00 : f32
    %62 = vector.broadcast %cst_48 : f32 to vector<1x128xf32>
    %63 = arith.maximumf %61, %62 : vector<1x128xf32>
    %c0_49 = arith.constant 0 : index
    %c0_50 = arith.constant 0 : index
    %64 = vector.load %arg5[%c0_49, %c0_50] : memref<1x128xf32, #tpu.memory_space<vmem>>, vector<1x128xf32>
    %cst_51 = arith.constant 9.99999974E-6 : f32
    %65 = vector.broadcast %cst_51 : f32 to vector<1x128xf32>
    %66 = arith.addf %63, %65 : vector<1x128xf32>
    %67 = math.rsqrt %66 : vector<1x128xf32>
    %68 = arith.mulf %64, %67 : vector<1x128xf32>
    %c0_52 = arith.constant 0 : index
    %c0_53 = arith.constant 0 : index
    %69 = vector.load %arg6[%c0_52, %c0_53] : memref<1x128xf32, #tpu.memory_space<vmem>>, vector<1x128xf32>
    %70 = arith.mulf %57, %68 : vector<1x128xf32>
    %71 = arith.subf %69, %70 : vector<1x128xf32>
    %72 = vector.broadcast %68 : vector<1x128xf32> to vector<32x128xf32>
    %73 = arith.mulf %50, %72 : vector<32x128xf32>
    %74 = vector.broadcast %71 : vector<1x128xf32> to vector<32x128xf32>
    %75 = arith.addf %73, %74 : vector<32x128xf32>
    %76 = arith.addf %75, %3 : vector<32x128xf32>
    %cst_54 = arith.constant 0.000000e+00 : f32
    %77 = vector.broadcast %cst_54 : f32 to vector<32x128xf32>
    %78 = arith.maximumf %76, %77 : vector<32x128xf32>
    %79 = arith.truncf %78 : vector<32x128xf32> to vector<32x128xbf16>
    %c0_55 = arith.constant 0 : index
    %c0_56 = arith.constant 0 : index
    %80 = vector.load %arg3[%c0_55, %c0_56] : memref<128x128xbf16, #tpu.memory_space<vmem>>, vector<128x128xbf16>
    %cst_57 = arith.constant dense<0.000000e+00> : vector<32x128xf32>
    %81 = tpu.matmul %79, %80, %cst_57 {dimension_numbers = #tpu.dot_dimension_numbers<[1], [0], [0], [1], [0, 0, 1, 1], [], []>} : vector<32x128xbf16>, vector<128x128xbf16>, vector<32x128xf32> -> vector<32x128xf32>
    %c0_58 = arith.constant 0 : index
    %c0_59 = arith.constant 0 : index
    %82 = vector.load %arg4[%c0_58, %c0_59] : memref<1x128xf32, #tpu.memory_space<vmem>>, vector<1x128xf32>
    %83 = vector.broadcast %82 : vector<1x128xf32> to vector<32x128xf32>
    %84 = arith.addf %81, %83 : vector<32x128xf32>
    %c0_60 = arith.constant 0 : index
    %c0_61 = arith.constant 0 : index
    %85 = vector.load %arg7[%c0_60, %c0_61] : memref<32x128xf32, #tpu.memory_space<vmem>>, vector<32x128xf32>
    tpu.vector_store %arg7[%c0_60, %c0_61], %84 {strides = array<i32>} : memref<32x128xf32, #tpu.memory_space<vmem>>, vector<32x128xf32>,
    return
  }
}

</mosaic_0001>

<llo_original>
// kernel: tpu_custom_call.1
$region0: #{tpu_custom_call.1}
  #allocation0 [shape = 'u32[]', space=smem, size = 0x4, offset = 0x4, fixed_abs, tag = 'smem constant byte address 0x4 - core index']
  #allocation1 [shape = 'u32[72,128]{1,0:T(1,128)}', space=vmem, size = 0x9000, scoped, tag = 'internal scratch']
  #allocation2 [shape = 'bf16[2,34,128]{2,1,0:T(8,128)(2,1)}', space=vmem, size = 0x5000, scoped, tag = 'scratch operand']
  %s0 = inlined_call_operand.hbm [shape: f32[32,128], index: 0, kind: input, shape index: {}]
  %s1 = inlined_call_operand.hbm [shape: bf16[384,128], index: 1, kind: input, shape index: {}]
  %s2 = inlined_call_operand.hbm [shape: bf16[384,128], index: 2, kind: input, shape index: {}]
  %s3 = inlined_call_operand.hbm [shape: bf16[128,128], index: 3, kind: input, shape index: {}]
  %s4 = inlined_call_operand.vmem [shape: f32[1,128], index: 4, kind: input, shape index: {}]
  %s5 = inlined_call_operand.vmem [shape: f32[1,128], index: 5, kind: input, shape index: {}]
  %s6 = inlined_call_operand.vmem [shape: f32[1,128], index: 6, kind: input, shape index: {}]
  %s7 = inlined_call_operand.hbm [shape: f32[32,128], index: 7, kind: output, shape index: {}]
  %s8 = sld [smem:[#allocation0]]
  $region54: #{tpu_custom_call.1} parent=0
    _
  %s10 = ssub.s32 1, %s8
  %s11 = scalar_select 0, %s10, %s8
  $region1: #{tpu_custom_call.1} parent=0
    #allocation3 [shape = 'u8[16384]{0}', space=vmem, size = 0x4000, scoped, tag = 'input window, operand 0, single buffered']
    #allocation4 [shape = 's32[1]{0}', space=sflag, size = 0x4, scoped, tag = 'scoped memory for tpu_custom_call.1']
    #allocation5 [shape = 's32[1]{0}', space=sflag, size = 0x4, scoped, tag = 'scoped memory for tpu_custom_call.1']
    #allocation6 [shape = 'u8[98304]{0}', space=vmem, size = 0x18000, scoped, tag = 'input window, operand 1, single buffered']
    #allocation7 [shape = 's32[1]{0}', space=sflag, size = 0x4, scoped, tag = 'scoped memory for tpu_custom_call.1']
    #allocation8 [shape = 'u8[98304]{0}', space=vmem, size = 0x18000, scoped, tag = 'input window, operand 2, single buffered']
    #allocation9 [shape = 'u8[32768]{0}', space=vmem, size = 0x8000, scoped, tag = 'input window, operand 3, single buffered']
    #allocation10 [shape = 's32[1]{0}', space=sflag, size = 0x4, scoped, tag = 'scoped memory for tpu_custom_call.1']
    #allocation11 [shape = 'u8[16384]{0}', space=vmem, size = 0x4000, scoped, tag = 'output window, operand 0, single buffered']
    %12 = vsyncpa [#allocation4], 0
    %13 = vsyncpa [#allocation7], 0
    %14 = vsyncpa [#allocation10], 0
    %15 = vsyncpa [#allocation5], 0
    // Predicated region
    $region2: #{tpu_custom_call.1} parent=1 // pred_check
      _
    $region3: #{tpu_custom_call.1} parent=1 // pred_check_branch
      %17 = sbr.rel (0) target = $region5
    $region4: #{tpu_custom_call.1} parent=1 // pred_region
      %19 = vsyncadd [#allocation4], 0
      %s20 = sshll.u32 %s0, 4
      %s21 = int_to_ptr.hbm [resolvable:$true] %s20
      %s22 = sshll.u32 [#allocation3], 4
      %s23 = int_to_ptr.vmem [resolvable:$true] %s22
      %28 = dma.hbm_to_vmem [thread:$0]  %s21, 512, %s23, [#allocation4], 128, 128, 8
    $region5: #{tpu_custom_call.1} parent=1 // pred_fallthru
      _
    // Predicated region
    $region6: #{tpu_custom_call.1} parent=1 // pred_check
      _
    $region7: #{tpu_custom_call.1} parent=1 // pred_check_branch
      %30 = sbr.rel (0) target = $region9
    $region8: #{tpu_custom_call.1} parent=1 // pred_region
      %32 = vsyncadd [#allocation7], 0
      %s33 = sshll.u32 %s1, 4
      %s34 = int_to_ptr.hbm [resolvable:$true] %s33
      %s35 = sshll.u32 [#allocation6], 4
      %s36 = int_to_ptr.vmem [resolvable:$true] %s35
      %41 = dma.hbm_to_vmem [thread:$0]  %s34, 3072, %s36, [#allocation7], 64, 64, 4
    $region9: #{tpu_custom_call.1} parent=1 // pred_fallthru
      _
    // Predicated region
    $region10: #{tpu_custom_call.1} parent=1 // pred_check
      _
    $region11: #{tpu_custom_call.1} parent=1 // pred_check_branch
      %43 = sbr.rel (0) target = $region13
    $region12: #{tpu_custom_call.1} parent=1 // pred_region
      %45 = vsyncadd [#allocation7], 0
      %s46 = sshll.u32 %s2, 4
      %s47 = int_to_ptr.hbm [resolvable:$true] %s46
      %s48 = sshll.u32 [#allocation8], 4
      %s49 = int_to_ptr.vmem [resolvable:$true] %s48
      %54 = dma.hbm_to_vmem [thread:$0]  %s47, 3072, %s49, [#allocation7], 64, 64, 4
    $region13: #{tpu_custom_call.1} parent=1 // pred_fallthru
      _
    // Predicated region
    $region14: #{tpu_custom_call.1} parent=1 // pred_check
      _
    $region15: #{tpu_custom_call.1} parent=1 // pred_check_branch
      %56 = sbr.rel (0) target = $region17
    $region16: #{tpu_custom_call.1} parent=1 // pred_region
      %58 = vsyncadd [#allocation10], 0
      %s59 = sshll.u32 %s3, 4
      %s60 = int_to_ptr.hbm [resolvable:$true] %s59
      %s61 = sshll.u32 [#allocation9], 4
      %s62 = int_to_ptr.vmem [resolvable:$true] %s61
      %67 = dma.hbm_to_vmem [thread:$0]  %s60, 1024, %s62, [#allocation10], 64, 64, 4
    $region17: #{tpu_custom_call.1} parent=1 // pred_fallthru
      _
    // Predicated region
    $region18: #{tpu_custom_call.1} parent=1 // pred_check
      _
    $region19: #{tpu_custom_call.1} parent=1 // pred_check_branch
      %69 = sbr.rel (0) target = $region21
    $region20: #{tpu_custom_call.1} parent=1 // pred_region
      _
    $region21: #{tpu_custom_call.1} parent=1 // pred_fallthru
      _
    // Predicated region
    $region22: #{tpu_custom_call.1} parent=1 // pred_check
      _
    $region23: #{tpu_custom_call.1} parent=1 // pred_check_branch
      %71 = sbr.rel (0) target = $region25
    $region24: #{tpu_custom_call.1} parent=1 // pred_region
      _
    $region25: #{tpu_custom_call.1} parent=1 // pred_fallthru
      _
    // Predicated region
    $region26: #{tpu_custom_call.1} parent=1 // pred_check
      _
    $region27: #{tpu_custom_call.1} parent=1 // pred_check_branch
      %73 = sbr.rel (0) target = $region29
    $region28: #{tpu_custom_call.1} parent=1 // pred_region
      _
    $region29: #{tpu_custom_call.1} parent=1 // pred_fallthru
      _
    // Predicated region
    $region30: #{tpu_custom_call.1} parent=1 // pred_check
      _
    $region31: #{tpu_custom_call.1} parent=1 // pred_check_branch
      %75 = sbr.rel (0) target = $region33
    $region32: #{tpu_custom_call.1} parent=1 // pred_region
      %77 = dma.done [#allocation4], 512
    $region33: #{tpu_custom_call.1} parent=1 // pred_fallthru
      _
    // Predicated region
    $region34: #{tpu_custom_call.1} parent=1 // pred_check
      _
    $region35: #{tpu_custom_call.1} parent=1 // pred_check_branch
      %79 = sbr.rel (0) target = $region37
    $region36: #{tpu_custom_call.1} parent=1 // pred_region
      %81 = dma.done [#allocation7], 3072
    $region37: #{tpu_custom_call.1} parent=1 // pred_fallthru
      _
    // Predicated region
    $region38: #{tpu_custom_call.1} parent=1 // pred_check
      _
    $region39: #{tpu_custom_call.1} parent=1 // pred_check_branch
      %83 = sbr.rel (0) target = $region41
    $region40: #{tpu_custom_call.1} parent=1 // pred_region
      %85 = dma.done [#allocation7], 3072
    $region41: #{tpu_custom_call.1} parent=1 // pred_fallthru
      _
    // Predicated region
    $region42: #{tpu_custom_call.1} parent=1 // pred_check
      _
    $region43: #{tpu_custom_call.1} parent=1 // pred_check_branch
      %87 = sbr.rel (0) target = $region45
    $region44: #{tpu_custom_call.1} parent=1 // pred_region
      %89 = dma.done [#allocation10], 1024
    $region45: #{tpu_custom_call.1} parent=1 // pred_fallthru
      _
    %91 = vst [vmem:[#allocation2 + $0x4] sm:$0x8] 0
    %92 = vst [vmem:[#allocation2 + $0x18] sm:$0x8] 0
    %93 = vst [vmem:[#allocation2 + $0x10] sm:$0x1] 0
    %94 = vst [vmem:[#allocation2 + $0x24] sm:$0x1] 0
    %v95 = vld [vmem:[#allocation3] sm:$0xff]
    %v96 = vld [vmem:[#allocation3 + $0x8] sm:$0xff]
    %v97 = vld [vmem:[#allocation3 + $0x10] sm:$0xff]
    %v98 = vld [vmem:[#allocation3 + $0x18] sm:$0xff]
    %v99 = vpack.c.bf16 %v95, %v95
    %v100 = vpack.c.bf16 %v96, %v96
    %v101 = vpack.c.bf16 %v97, %v97
    %v102 = vpack.c.bf16 %v98, %v98
    %103 = vst [vmem:[#allocation2 + $0x8] sm:$0xf] %v99
    %104 = vst [vmem:[#allocation2 + $0xc] sm:$0xf] %v100
    %105 = vst [vmem:[#allocation2 + $0x1c] sm:$0xf] %v101
    %106 = vst [vmem:[#allocation2 + $0x20] sm:$0xf] %v102
    %v107 = vld [vmem:[#allocation2 + $0x4] sm:$0x8]
    %v108 = vld [vmem:[#allocation2 + $0x8] sm:$0xf]
    %v109 = vld [vmem:[#allocation2 + $0xc] sm:$0x7]
    %v110 = vld [vmem:[#allocation2 + $0x18] sm:$0x8]
    %v111 = vld [vmem:[#allocation2 + $0x1c] sm:$0xf]
    %v112 = vld [vmem:[#allocation2 + $0x20] sm:$0x7]
    %v113 = vld [vmem:[#allocation2 + $0xc] sm:$0xf]
    %v114 = vld [vmem:[#allocation2 + $0x20] sm:$0xf]
    %v115 = vld [vmem:[#allocation2 + $0x8] sm:$0xe]
    %v116 = vld [vmem:[#allocation2 + $0x10] sm:$0x1]
    %v117 = vld [vmem:[#allocation2 + $0x1c] sm:$0xe]
    %v118 = vld [vmem:[#allocation2 + $0x24] sm:$0x1]
    %v125 = vunpack.c.l.b16 %v107
    %v126 = vunpack.c.l.b16 %v108
    %v127 = vunpack.c.l.b16 %v109
    %v128 = vunpack.c.l.b16 %v110
    %v129 = vunpack.c.l.b16 %v111
    %v130 = vunpack.c.l.b16 %v112
    %v131 = vpack.c.b16 %v126, %v125
    %v132 = vpack.c.b16 %v127, %v127
    %v133 = vpack.c.b16 %v129, %v128
    %v134 = vpack.c.b16 %v130, %v130
    %v137 = vunpack.c.l.b16 %v113
    %v138 = vunpack.c.l.b16 %v114
    %v139 = vpack.c.b16 %v137, %v126
    %v140 = vpack.c.b16 %v138, %v129
    %v141 = vrot.slane %v139, 5
    %v142 = vrot.slane %v140, 5
    %v147 = vunpack.c.l.b16 %v115
    %v148 = vunpack.c.l.b16 %v116
    %v149 = vunpack.c.l.b16 %v117
    %v150 = vunpack.c.l.b16 %v118
    %v151 = vpack.c.b16 %v137, %v147
    %v152 = vpack.c.b16 %v148, %v148
    %v153 = vpack.c.b16 %v138, %v149
    %v154 = vpack.c.b16 %v150, %v150
    %vm155 = vcmask 1041408
    %v156 = vrot.slane %v151, 6
    %v157 = vrot.slane %v152, 6
    %v158 = vsel %vm155, %v156, %v157
    %v159 = vrot.slane %v153, 6
    %v160 = vrot.slane %v154, 6
    %v161 = vsel %vm155, %v159, %v160
    %vm162 = vcmask 1044480
    %v163 = vrot.slane %v131, 3
    %v164 = vrot.slane %v132, 3
    %v165 = vsel %vm162, %v163, %v164
    %v166 = vrot.slane %v141, 3
    %v167 = vsel %vm162, %v166, %v166
    %v168 = vrot.slane %v156, 3
    %v169 = vrot.slane %v158, 3
    %v170 = vsel %vm162, %v168, %v169
    %v171 = vrot.slane %v133, 3
    %v172 = vrot.slane %v134, 3
    %v173 = vsel %vm162, %v171, %v172
    %v174 = vrot.slane %v142, 3
    %v175 = vsel %vm162, %v174, %v174
    %v176 = vrot.slane %v159, 3
    %v177 = vrot.slane %v161, 3
    %v178 = vsel %vm162, %v176, %v177
    %v185 = vld [vmem:[#allocation6] sm:$0xf]
    %v186 = vld [vmem:[#allocation6 + $0x4] sm:$0xf]
    %v187 = vld [vmem:[#allocation6 + $0x8] sm:$0xf]
    %v188 = vld [vmem:[#allocation6 + $0xc] sm:$0xf]
    %v189 = vld [vmem:[#allocation6 + $0x10] sm:$0xf]
    %v190 = vld [vmem:[#allocation6 + $0x14] sm:$0xf]
    %v191 = vld [vmem:[#allocation6 + $0x18] sm:$0xf]
    %v192 = vld [vmem:[#allocation6 + $0x1c] sm:$0xf]
    %v193 = vld [vmem:[#allocation6 + $0x20] sm:$0xf]
    %v194 = vld [vmem:[#allocation6 + $0x24] sm:$0xf]
    %v195 = vld [vmem:[#allocation6 + $0x28] sm:$0xf]
    %v196 = vld [vmem:[#allocation6 + $0x2c] sm:$0xf]
    %v197 = vld [vmem:[#allocation6 + $0x30] sm:$0xf]
    %v198 = vld [vmem:[#allocation6 + $0x34] sm:$0xf]
    %v199 = vld [vmem:[#allocation6 + $0x38] sm:$0xf]
    %v200 = vld [vmem:[#allocation6 + $0x3c] sm:$0xf]
    %v201 = vld [vmem:[#allocation6 + $0x40] sm:$0xf]
    %v202 = vld [vmem:[#allocation6 + $0x44] sm:$0xf]
    %v203 = vld [vmem:[#allocation6 + $0x48] sm:$0xf]
    %v204 = vld [vmem:[#allocation6 + $0x4c] sm:$0xf]
    %v205 = vld [vmem:[#allocation6 + $0x50] sm:$0xf]
    %v206 = vld [vmem:[#allocation6 + $0x54] sm:$0xf]
    %v207 = vld [vmem:[#allocation6 + $0x58] sm:$0xf]
    %v208 = vld [vmem:[#allocation6 + $0x5c] sm:$0xf]
    %v209 = vld [vmem:[#allocation6 + $0x60] sm:$0xf]
    %v210 = vld [vmem:[#allocation6 + $0x64] sm:$0xf]
    %v211 = vld [vmem:[#allocation6 + $0x68] sm:$0xf]
    %v212 = vld [vmem:[#allocation6 + $0x6c] sm:$0xf]
    %v213 = vld [vmem:[#allocation6 + $0x70] sm:$0xf]
    %v214 = vld [vmem:[#allocation6 + $0x74] sm:$0xf]
    %v215 = vld [vmem:[#allocation6 + $0x78] sm:$0xf]
    %v216 = vld [vmem:[#allocation6 + $0x7c] sm:$0xf]
    %v217 = vld [vmem:[#allocation6 + $0x80] sm:$0xf]
    %v218 = vld [vmem:[#allocation6 + $0x84] sm:$0xf]
    %v219 = vld [vmem:[#allocation6 + $0x88] sm:$0xf]
    %v220 = vld [vmem:[#allocation6 + $0x8c] sm:$0xf]
    %v221 = vld [vmem:[#allocation6 + $0x90] sm:$0xf]
    %v222 = vld [vmem:[#allocation6 + $0x94] sm:$0xf]
    %v223 = vld [vmem:[#allocation6 + $0x98] sm:$0xf]
    %v224 = vld [vmem:[#allocation6 + $0x9c] sm:$0xf]
    %v225 = vld [vmem:[#allocation6 + $0xa0] sm:$0xf]
    %v226 = vld [vmem:[#allocation6 + $0xa4] sm:$0xf]
    %v227 = vld [vmem:[#allocation6 + $0xa8] sm:$0xf]
    %v228 = vld [vmem:[#allocation6 + $0xac] sm:$0xf]
    %v229 = vld [vmem:[#allocation6 + $0xb0] sm:$0xf]
    %v230 = vld [vmem:[#allocation6 + $0xb4] sm:$0xf]
    %v231 = vld [vmem:[#allocation6 + $0xb8] sm:$0xf]
    %v232 = vld [vmem:[#allocation6 + $0xbc] sm:$0xf]
    %v281 = vunpack.c.l.b16 %v185
    %v282 = vunpack.c.l.b16 %v186
    %v283 = vunpack.c.l.b16 %v187
    %v284 = vunpack.c.l.b16 %v188
    %v285 = vunpack.c.l.b16 %v189
    %v286 = vunpack.c.l.b16 %v190
    %v287 = vunpack.c.l.b16 %v191
    %v288 = vunpack.c.l.b16 %v192
    %v289 = vunpack.c.l.b16 %v193
    %v290 = vunpack.c.l.b16 %v194
    %v291 = vunpack.c.l.b16 %v195
    %v292 = vunpack.c.l.b16 %v196
    %v293 = vunpack.c.l.b16 %v197
    %v294 = vunpack.c.l.b16 %v198
    %v295 = vunpack.c.l.b16 %v199
    %v296 = vunpack.c.l.b16 %v200
    %v297 = vunpack.c.l.b16 %v201
    %v298 = vunpack.c.l.b16 %v202
    %v299 = vunpack.c.l.b16 %v203
    %v300 = vunpack.c.l.b16 %v204
    %v301 = vunpack.c.l.b16 %v205
    %v302 = vunpack.c.l.b16 %v206
    %v303 = vunpack.c.l.b16 %v207
    %v304 = vunpack.c.l.b16 %v208
    %v305 = vunpack.c.l.b16 %v209
    %v306 = vunpack.c.l.b16 %v210
    %v307 = vunpack.c.l.b16 %v211
    %v308 = vunpack.c.l.b16 %v212
    %v309 = vunpack.c.l.b16 %v213
    %v310 = vunpack.c.l.b16 %v214
    %v311 = vunpack.c.l.b16 %v215
    %v312 = vunpack.c.l.b16 %v216
    %v313 = vunpack.c.l.b16 %v217
    %v314 = vunpack.c.l.b16 %v218
    %v315 = vunpack.c.l.b16 %v219
    %v316 = vunpack.c.l.b16 %v220
    %v317 = vunpack.c.l.b16 %v221
    %v318 = vunpack.c.l.b16 %v222
    %v319 = vunpack.c.l.b16 %v223
    %v320 = vunpack.c.l.b16 %v224
    %v321 = vunpack.c.l.b16 %v225
    %v322 = vunpack.c.l.b16 %v226
    %v323 = vunpack.c.l.b16 %v227
    %v324 = vunpack.c.l.b16 %v228
    %v325 = vunpack.c.l.b16 %v229
    %v326 = vunpack.c.l.b16 %v230
    %v327 = vunpack.c.l.b16 %v231
    %v328 = vunpack.c.l.b16 %v232
    %v329 = vpack.c.b16 %v282, %v281
    %v330 = vpack.c.b16 %v284, %v283
    %v331 = vpack.c.b16 %v286, %v285
    %v332 = vpack.c.b16 %v288, %v287
    %v333 = vpack.c.b16 %v290, %v289
    %v334 = vpack.c.b16 %v292, %v291
    %v335 = vpack.c.b16 %v294, %v293
    %v336 = vpack.c.b16 %v296, %v295
    %v337 = vpack.c.b16 %v298, %v297
    %v338 = vpack.c.b16 %v300, %v299
    %v339 = vpack.c.b16 %v302, %v301
    %v340 = vpack.c.b16 %v304, %v303
    %v341 = vpack.c.b16 %v306, %v305
    %v342 = vpack.c.b16 %v308, %v307
    %v343 = vpack.c.b16 %v310, %v309
    %v344 = vpack.c.b16 %v312, %v311
    %v345 = vpack.c.b16 %v314, %v313
    %v346 = vpack.c.b16 %v316, %v315
    %v347 = vpack.c.b16 %v318, %v317
    %v348 = vpack.c.b16 %v320, %v319
    %v349 = vpack.c.b16 %v322, %v321
    %v350 = vpack.c.b16 %v324, %v323
    %v351 = vpack.c.b16 %v326, %v325
    %v352 = vpack.c.b16 %v328, %v327
    %377 = vmatpush.bf16.msra.mxu0 %v336
    %378 = vmatpush.bf16.msra.mxu0 %v335
    %379 = vmatpush.bf16.msra.mxu0 %v334
    %380 = vmatpush.bf16.msra.mxu0 %v333
    %381 = vmatpush.bf16.msra.mxu0 %v332
    %382 = vmatpush.bf16.msra.mxu0 %v331
    %383 = vmatpush.bf16.msra.mxu0 %v330
    %384 = vmatpush.bf16.msra.mxu0 %v329
    %385 = vmatmul.bf16.gmra.mxu0 %v165
    %v386 = vpop.f32.mrf.mxu0
    %v387 = vadd.f32 0.0, %v386
    %v388 = vpop.f32.mrf.mxu0
    %v389 = vadd.f32 0.0, %v388
    %390 = vmatmul.bf16.gmra.mxu0 %v173
    %v391 = vpop.f32.mrf.mxu0
    %v392 = vadd.f32 0.0, %v391
    %v393 = vpop.f32.mrf.mxu0
    %v394 = vadd.f32 0.0, %v393
    %395 = vdwg.mxu0
    %396 = vmatpush.bf16.msra.mxu0 %v344
    %397 = vmatpush.bf16.msra.mxu0 %v343
    %398 = vmatpush.bf16.msra.mxu0 %v342
    %399 = vmatpush.bf16.msra.mxu0 %v341
    %400 = vmatpush.bf16.msra.mxu0 %v340
    %401 = vmatpush.bf16.msra.mxu0 %v339
    %402 = vmatpush.bf16.msra.mxu0 %v338
    %403 = vmatpush.bf16.msra.mxu0 %v337
    %404 = vmatmul.bf16.gmra.mxu0 %v167
    %v405 = vpop.f32.mrf.mxu0
    %v406 = vadd.f32 %v387, %v405
    %v407 = vpop.f32.mrf.mxu0
    %v408 = vadd.f32 %v389, %v407
    %409 = vmatmul.bf16.gmra.mxu0 %v175
    %v410 = vpop.f32.mrf.mxu0
    %v411 = vadd.f32 %v392, %v410
    %v412 = vpop.f32.mrf.mxu0
    %v413 = vadd.f32 %v394, %v412
    %414 = vdwg.mxu0
    %415 = vmatpush.bf16.msra.mxu0 %v352
    %416 = vmatpush.bf16.msra.mxu0 %v351
    %417 = vmatpush.bf16.msra.mxu0 %v350
    %418 = vmatpush.bf16.msra.mxu0 %v349
    %419 = vmatpush.bf16.msra.mxu0 %v348
    %420 = vmatpush.bf16.msra.mxu0 %v347
    %421 = vmatpush.bf16.msra.mxu0 %v346
    %422 = vmatpush.bf16.msra.mxu0 %v345
    %423 = vmatmul.bf16.gmra.mxu0 %v170
    %v424 = vpop.f32.mrf.mxu0
    %v425 = vadd.f32 %v406, %v424
    %v426 = vpop.f32.mrf.mxu0
    %v427 = vadd.f32 %v408, %v426
    %428 = vmatmul.bf16.gmra.mxu0 %v178
    %v429 = vpop.f32.mrf.mxu0
    %v430 = vadd.f32 %v411, %v429
    %v431 = vpop.f32.mrf.mxu0
    %v432 = vadd.f32 %v413, %v431
    %433 = vdwg.mxu0
    %v434 = vadd.f32 %v425, %v427
    %v435 = vadd.f32 %v434, %v430
    %v436 = vadd.f32 %v435, %v432
    %v437 = vrot.slane %v436, 4
    %v438 = vadd.f32 %v436, %v437
    %v439 = vrot.slane %v438, 2
    %v440 = vadd.f32 %v438, %v439
    %v441 = vrot.slane %v440, 1
    %v442 = vadd.f32 %v440, %v441
    %v443 = vmul.f32 %v425, %v425
    %v444 = vmul.f32 %v427, %v427
    %v445 = vmul.f32 %v430, %v430
    %v446 = vmul.f32 %v432, %v432
    %v447 = vadd.f32 %v443, %v444
    %v448 = vadd.f32 %v447, %v445
    %v449 = vadd.f32 %v448, %v446
    %v450 = vrot.slane %v449, 4
    %v451 = vadd.f32 %v449, %v450
    %v452 = vrot.slane %v451, 2
    %v453 = vadd.f32 %v451, %v452
    %v454 = vrot.slane %v453, 1
    %v455 = vadd.f32 %v453, %v454
    %v456 = vmul.f32 %v442, 0.03125
    %v457 = vmul.f32 %v455, 0.03125
    %v458 = vmul.f32 %v456, %v456
    %v459 = vsub.f32 %v457, %v458
    %v460 = vmax.f32 %v459, 0.0
    %v461 = vld [vmem:[%s5] sm:$0x1]
    %v462 = vadd.f32 %v460, 1e-05
    %v463 = vrsqrt.pop %v462
    %v464 = vmul.f32 %v463, %v462
    %v465 = vmul.f32 %v464, %v463
    %v466 = vmul.f32 0.5, %v465
    %v467 = vsub.f32 1.5, %v466
    %v468 = vmul.f32 %v463, %v467
    %vm469 = vweird.f32 %v462
    %vm470 = vweird.f32 %v463
    %vm471 = vmor %vm469, %vm470
    %v472 = vsel %vm471, %v463, %v468
    %v473 = vmul.f32 %v461, %v472
    %v474 = vld [vmem:[%s6] sm:$0x1]
    %v475 = vmul.f32 %v456, %v473
    %v476 = vsub.f32 %v474, %v475
    %v478 = vperm.slane %v473, 0
    %v480 = vmul.f32 %v425, %v478
    %v481 = vmul.f32 %v427, %v478
    %v482 = vmul.f32 %v430, %v478
    %v483 = vmul.f32 %v432, %v478
    %v485 = vperm.slane %v476, 0
    %v487 = vadd.f32 %v480, %v485
    %v488 = vadd.f32 %v481, %v485
    %v489 = vadd.f32 %v482, %v485
    %v490 = vadd.f32 %v483, %v485
    %v491 = vmax.f32 %v487, 0.0
    %v492 = vmax.f32 %v488, 0.0
    %v493 = vmax.f32 %v489, 0.0
    %v494 = vmax.f32 %v490, 0.0
    %v495 = vpack.c.bf16 %v491, %v491
    %v496 = vpack.c.bf16 %v492, %v492
    %v497 = vpack.c.bf16 %v493, %v493
    %v498 = vpack.c.bf16 %v494, %v494
    %499 = vst [vmem:[#allocation2 + $0x8] sm:$0xf] %v495
    %500 = vst [vmem:[#allocation2 + $0xc] sm:$0xf] %v496
    %501 = vst [vmem:[#allocation2 + $0x1c] sm:$0xf] %v497
    %502 = vst [vmem:[#allocation2 + $0x20] sm:$0xf] %v498
    %v503 = vld [vmem:[#allocation2 + $0x4] sm:$0x8]
    %v504 = vld [vmem:[#allocation2 + $0x8] sm:$0xf]
    %v505 = vld [vmem:[#allocation2 + $0xc] sm:$0x7]
    %v506 = vld [vmem:[#allocation2 + $0x18] sm:$0x8]
    %v507 = vld [vmem:[#allocation2 + $0x1c] sm:$0xf]
    %v508 = vld [vmem:[#allocation2 + $0x20] sm:$0x7]
    %v509 = vld [vmem:[#allocation2 + $0xc] sm:$0xf]
    %v510 = vld [vmem:[#allocation2 + $0x20] sm:$0xf]
    %v511 = vld [vmem:[#allocation2 + $0x8] sm:$0xe]
    %v512 = vld [vmem:[#allocation2 + $0x10] sm:$0x1]
    %v513 = vld [vmem:[#allocation2 + $0x1c] sm:$0xe]
    %v514 = vld [vmem:[#allocation2 + $0x24] sm:$0x1]
    %v521 = vunpack.c.l.b16 %v503
    %v522 = vunpack.c.l.b16 %v504
    %v523 = vunpack.c.l.b16 %v505
    %v524 = vunpack.c.l.b16 %v506
    %v525 = vunpack.c.l.b16 %v507
    %v526 = vunpack.c.l.b16 %v508
    %v527 = vpack.c.b16 %v522, %v521
    %v528 = vpack.c.b16 %v523, %v523
    %v529 = vpack.c.b16 %v525, %v524
    %v530 = vpack.c.b16 %v526, %v526
    %v533 = vunpack.c.l.b16 %v509
    %v534 = vunpack.c.l.b16 %v510
    %v535 = vpack.c.b16 %v533, %v522
    %v536 = vpack.c.b16 %v534, %v525
    %v537 = vrot.slane %v535, 5
    %v538 = vrot.slane %v536, 5
    %v543 = vunpack.c.l.b16 %v511
    %v544 = vunpack.c.l.b16 %v512
    %v545 = vunpack.c.l.b16 %v513
    %v546 = vunpack.c.l.b16 %v514
    %v547 = vpack.c.b16 %v533, %v543
    %v548 = vpack.c.b16 %v544, %v544
    %v549 = vpack.c.b16 %v534, %v545
    %v550 = vpack.c.b16 %v546, %v546
    %v551 = vrot.slane %v547, 6
    %v552 = vrot.slane %v548, 6
    %v553 = vsel %vm155, %v551, %v552
    %v554 = vrot.slane %v549, 6
    %v555 = vrot.slane %v550, 6
    %v556 = vsel %vm155, %v554, %v555
    %v557 = vrot.slane %v527, 3
    %v558 = vrot.slane %v528, 3
    %v559 = vsel %vm162, %v557, %v558
    %v560 = vrot.slane %v537, 3
    %v561 = vsel %vm162, %v560, %v560
    %v562 = vrot.slane %v551, 3
    %v563 = vrot.slane %v553, 3
    %v564 = vsel %vm162, %v562, %v563
    %v565 = vrot.slane %v529, 3
    %v566 = vrot.slane %v530, 3
    %v567 = vsel %vm162, %v565, %v566
    %v568 = vrot.slane %v538, 3
    %v569 = vsel %vm162, %v568, %v568
    %v570 = vrot.slane %v554, 3
    %v571 = vrot.slane %v556, 3
    %v572 = vsel %vm162, %v570, %v571
    %v579 = vld [vmem:[#allocation8] sm:$0xf]
    %v580 = vld [vmem:[#allocation8 + $0x4] sm:$0xf]
    %v581 = vld [vmem:[#allocation8 + $0x8] sm:$0xf]
    %v582 = vld [vmem:[#allocation8 + $0xc] sm:$0xf]
    %v583 = vld [vmem:[#allocation8 + $0x10] sm:$0xf]
    %v584 = vld [vmem:[#allocation8 + $0x14] sm:$0xf]
    %v585 = vld [vmem:[#allocation8 + $0x18] sm:$0xf]
    %v586 = vld [vmem:[#allocation8 + $0x1c] sm:$0xf]
    %v587 = vld [vmem:[#allocation8 + $0x20] sm:$0xf]
    %v588 = vld [vmem:[#allocation8 + $0x24] sm:$0xf]
    %v589 = vld [vmem:[#allocation8 + $0x28] sm:$0xf]
    %v590 = vld [vmem:[#allocation8 + $0x2c] sm:$0xf]
    %v591 = vld [vmem:[#allocation8 + $0x30] sm:$0xf]
    %v592 = vld [vmem:[#allocation8 + $0x34] sm:$0xf]
    %v593 = vld [vmem:[#allocation8 + $0x38] sm:$0xf]
    %v594 = vld [vmem:[#allocation8 + $0x3c] sm:$0xf]
    %v595 = vld [vmem:[#allocation8 + $0x40] sm:$0xf]
    %v596 = vld [vmem:[#allocation8 + $0x44] sm:$0xf]
    %v597 = vld [vmem:[#allocation8 + $0x48] sm:$0xf]
    %v598 = vld [vmem:[#allocation8 + $0x4c] sm:$0xf]
    %v599 = vld [vmem:[#allocation8 + $0x50] sm:$0xf]
    %v600 = vld [vmem:[#allocation8 + $0x54] sm:$0xf]
    %v601 = vld [vmem:[#allocation8 + $0x58] sm:$0xf]
    %v602 = vld [vmem:[#allocation8 + $0x5c] sm:$0xf]
    %v603 = vld [vmem:[#allocation8 + $0x60] sm:$0xf]
    %v604 = vld [vmem:[#allocation8 + $0x64] sm:$0xf]
    %v605 = vld [vmem:[#allocation8 + $0x68] sm:$0xf]
    %v606 = vld [vmem:[#allocation8 + $0x6c] sm:$0xf]
    %v607 = vld [vmem:[#allocation8 + $0x70] sm:$0xf]
    %v608 = vld [vmem:[#allocation8 + $0x74] sm:$0xf]
    %v609 = vld [vmem:[#allocation8 + $0x78] sm:$0xf]
    %v610 = vld [vmem:[#allocation8 + $0x7c] sm:$0xf]
    %v611 = vld [vmem:[#allocation8 + $0x80] sm:$0xf]
    %v612 = vld [vmem:[#allocation8 + $0x84] sm:$0xf]
    %v613 = vld [vmem:[#allocation8 + $0x88] sm:$0xf]
    %v614 = vld [vmem:[#allocation8 + $0x8c] sm:$0xf]
    %v615 = vld [vmem:[#allocation8 + $0x90] sm:$0xf]
    %v616 = vld [vmem:[#allocation8 + $0x94] sm:$0xf]
    %v617 = vld [vmem:[#allocation8 + $0x98] sm:$0xf]
    %v618 = vld [vmem:[#allocation8 + $0x9c] sm:$0xf]
    %v619 = vld [vmem:[#allocation8 + $0xa0] sm:$0xf]
    %v620 = vld [vmem:[#allocation8 + $0xa4] sm:$0xf]
    %v621 = vld [vmem:[#allocation8 + $0xa8] sm:$0xf]
    %v622 = vld [vmem:[#allocation8 + $0xac] sm:$0xf]
    %v623 = vld [vmem:[#allocation8 + $0xb0] sm:$0xf]
    %v624 = vld [vmem:[#allocation8 + $0xb4] sm:$0xf]
    %v625 = vld [vmem:[#allocation8 + $0xb8] sm:$0xf]
    %v626 = vld [vmem:[#allocation8 + $0xbc] sm:$0xf]
    %v675 = vunpack.c.l.b16 %v579
    %v676 = vunpack.c.l.b16 %v580
    %v677 = vunpack.c.l.b16 %v581
    %v678 = vunpack.c.l.b16 %v582
    %v679 = vunpack.c.l.b16 %v583
    %v680 = vunpack.c.l.b16 %v584
    %v681 = vunpack.c.l.b16 %v585
    %v682 = vunpack.c.l.b16 %v586
    %v683 = vunpack.c.l.b16 %v587
    %v684 = vunpack.c.l.b16 %v588
    %v685 = vunpack.c.l.b16 %v589
    %v686 = vunpack.c.l.b16 %v590
    %v687 = vunpack.c.l.b16 %v591
    %v688 = vunpack.c.l.b16 %v592
    %v689 = vunpack.c.l.b16 %v593
    %v690 = vunpack.c.l.b16 %v594
    %v691 = vunpack.c.l.b16 %v595
    %v692 = vunpack.c.l.b16 %v596
    %v693 = vunpack.c.l.b16 %v597
    %v694 = vunpack.c.l.b16 %v598
    %v695 = vunpack.c.l.b16 %v599
    %v696 = vunpack.c.l.b16 %v600
    %v697 = vunpack.c.l.b16 %v601
    %v698 = vunpack.c.l.b16 %v602
    %v699 = vunpack.c.l.b16 %v603
    %v700 = vunpack.c.l.b16 %v604
    %v701 = vunpack.c.l.b16 %v605
    %v702 = vunpack.c.l.b16 %v606
    %v703 = vunpack.c.l.b16 %v607
    %v704 = vunpack.c.l.b16 %v608
    %v705 = vunpack.c.l.b16 %v609
    %v706 = vunpack.c.l.b16 %v610
    %v707 = vunpack.c.l.b16 %v611
    %v708 = vunpack.c.l.b16 %v612
    %v709 = vunpack.c.l.b16 %v613
    %v710 = vunpack.c.l.b16 %v614
    %v711 = vunpack.c.l.b16 %v615
    %v712 = vunpack.c.l.b16 %v616
    %v713 = vunpack.c.l.b16 %v617
    %v714 = vunpack.c.l.b16 %v618
    %v715 = vunpack.c.l.b16 %v619
    %v716 = vunpack.c.l.b16 %v620
    %v717 = vunpack.c.l.b16 %v621
    %v718 = vunpack.c.l.b16 %v622
    %v719 = vunpack.c.l.b16 %v623
    %v720 = vunpack.c.l.b16 %v624
    %v721 = vunpack.c.l.b16 %v625
    %v722 = vunpack.c.l.b16 %v626
    %v723 = vpack.c.b16 %v676, %v675
    %v724 = vpack.c.b16 %v678, %v677
    %v725 = vpack.c.b16 %v680, %v679
    %v726 = vpack.c.b16 %v682, %v681
    %v727 = vpack.c.b16 %v684, %v683
    %v728 = vpack.c.b16 %v686, %v685
    %v729 = vpack.c.b16 %v688, %v687
    %v730 = vpack.c.b16 %v690, %v689
    %v731 = vpack.c.b16 %v692, %v691
    %v732 = vpack.c.b16 %v694, %v693
    %v733 = vpack.c.b16 %v696, %v695
    %v734 = vpack.c.b16 %v698, %v697
    %v735 = vpack.c.b16 %v700, %v699
    %v736 = vpack.c.b16 %v702, %v701
    %v737 = vpack.c.b16 %v704, %v703
    %v738 = vpack.c.b16 %v706, %v705
    %v739 = vpack.c.b16 %v708, %v707
    %v740 = vpack.c.b16 %v710, %v709
    %v741 = vpack.c.b16 %v712, %v711
    %v742 = vpack.c.b16 %v714, %v713
    %v743 = vpack.c.b16 %v716, %v715
    %v744 = vpack.c.b16 %v718, %v717
    %v745 = vpack.c.b16 %v720, %v719
    %v746 = vpack.c.b16 %v722, %v721
    %771 = vmatpush.bf16.msra.mxu0 %v730
    %772 = vmatpush.bf16.msra.mxu0 %v729
    %773 = vmatpush.bf16.msra.mxu0 %v728
    %774 = vmatpush.bf16.msra.mxu0 %v727
    %775 = vmatpush.bf16.msra.mxu0 %v726
    %776 = vmatpush.bf16.msra.mxu0 %v725
    %777 = vmatpush.bf16.msra.mxu0 %v724
    %778 = vmatpush.bf16.msra.mxu0 %v723
    %779 = vmatmul.bf16.gmra.mxu0 %v559
    %v780 = vpop.f32.mrf.mxu0
    %v781 = vadd.f32 0.0, %v780
    %v782 = vpop.f32.mrf.mxu0
    %v783 = vadd.f32 0.0, %v782
    %784 = vmatmul.bf16.gmra.mxu0 %v567
    %v785 = vpop.f32.mrf.mxu0
    %v786 = vadd.f32 0.0, %v785
    %v787 = vpop.f32.mrf.mxu0
    %v788 = vadd.f32 0.0, %v787
    %789 = vdwg.mxu0
    %790 = vmatpush.bf16.msra.mxu0 %v738
    %791 = vmatpush.bf16.msra.mxu0 %v737
    %792 = vmatpush.bf16.msra.mxu0 %v736
    %793 = vmatpush.bf16.msra.mxu0 %v735
    %794 = vmatpush.bf16.msra.mxu0 %v734
    %795 = vmatpush.bf16.msra.mxu0 %v733
    %796 = vmatpush.bf16.msra.mxu0 %v732
    %797 = vmatpush.bf16.msra.mxu0 %v731
    %798 = vmatmul.bf16.gmra.mxu0 %v561
    %v799 = vpop.f32.mrf.mxu0
    %v800 = vadd.f32 %v781, %v799
    %v801 = vpop.f32.mrf.mxu0
    %v802 = vadd.f32 %v783, %v801
    %803 = vmatmul.bf16.gmra.mxu0 %v569
    %v804 = vpop.f32.mrf.mxu0
    %v805 = vadd.f32 %v786, %v804
    %v806 = vpop.f32.mrf.mxu0
    %v807 = vadd.f32 %v788, %v806
    %808 = vdwg.mxu0
    %809 = vmatpush.bf16.msra.mxu0 %v746
    %810 = vmatpush.bf16.msra.mxu0 %v745
    %811 = vmatpush.bf16.msra.mxu0 %v744
    %812 = vmatpush.bf16.msra.mxu0 %v743
    %813 = vmatpush.bf16.msra.mxu0 %v742
    %814 = vmatpush.bf16.msra.mxu0 %v741
    %815 = vmatpush.bf16.msra.mxu0 %v740
    %816 = vmatpush.bf16.msra.mxu0 %v739
    %817 = vmatmul.bf16.gmra.mxu0 %v564
    %v818 = vpop.f32.mrf.mxu0
    %v819 = vadd.f32 %v800, %v818
    %v820 = vpop.f32.mrf.mxu0
    %v821 = vadd.f32 %v802, %v820
    %822 = vmatmul.bf16.gmra.mxu0 %v572
    %v823 = vpop.f32.mrf.mxu0
    %v824 = vadd.f32 %v805, %v823
    %v825 = vpop.f32.mrf.mxu0
    %v826 = vadd.f32 %v807, %v825
    %827 = vdwg.mxu0
    %v828 = vadd.f32 %v819, %v821
    %v829 = vadd.f32 %v828, %v824
    %v830 = vadd.f32 %v829, %v826
    %v831 = vrot.slane %v830, 4
    %v832 = vadd.f32 %v830, %v831
    %v833 = vrot.slane %v832, 2
    %v834 = vadd.f32 %v832, %v833
    %v835 = vrot.slane %v834, 1
    %v836 = vadd.f32 %v834, %v835
    %v837 = vmul.f32 %v819, %v819
    %v838 = vmul.f32 %v821, %v821
    %v839 = vmul.f32 %v824, %v824
    %v840 = vmul.f32 %v826, %v826
    %v841 = vadd.f32 %v837, %v838
    %v842 = vadd.f32 %v841, %v839
    %v843 = vadd.f32 %v842, %v840
    %v844 = vrot.slane %v843, 4
    %v845 = vadd.f32 %v843, %v844
    %v846 = vrot.slane %v845, 2
    %v847 = vadd.f32 %v845, %v846
    %v848 = vrot.slane %v847, 1
    %v849 = vadd.f32 %v847, %v848
    %v850 = vmul.f32 %v836, 0.03125
    %v851 = vmul.f32 %v849, 0.03125
    %v852 = vmul.f32 %v850, %v850
    %v853 = vsub.f32 %v851, %v852
    %v854 = vmax.f32 %v853, 0.0
    %v855 = vld [vmem:[%s5] sm:$0x1]
    %v856 = vadd.f32 %v854, 1e-05
    %v857 = vrsqrt.pop %v856
    %v858 = vmul.f32 %v857, %v856
    %v859 = vmul.f32 %v858, %v857
    %v860 = vmul.f32 0.5, %v859
    %v861 = vsub.f32 1.5, %v860
    %v862 = vmul.f32 %v857, %v861
    %vm863 = vweird.f32 %v856
    %vm864 = vweird.f32 %v857
    %vm865 = vmor %vm863, %vm864
    %v866 = vsel %vm865, %v857, %v862
    %v867 = vmul.f32 %v855, %v866
    %v868 = vld [vmem:[%s6] sm:$0x1]
    %v869 = vmul.f32 %v850, %v867
    %v870 = vsub.f32 %v868, %v869
    %v872 = vperm.slane %v867, 0
    %v874 = vmul.f32 %v819, %v872
    %v875 = vmul.f32 %v821, %v872
    %v876 = vmul.f32 %v824, %v872
    %v877 = vmul.f32 %v826, %v872
    %v879 = vperm.slane %v870, 0
    %v881 = vadd.f32 %v874, %v879
    %v882 = vadd.f32 %v875, %v879
    %v883 = vadd.f32 %v876, %v879
    %v884 = vadd.f32 %v877, %v879
    %v885 = vadd.f32 %v881, %v95
    %v886 = vadd.f32 %v882, %v96
    %v887 = vadd.f32 %v883, %v97
    %v888 = vadd.f32 %v884, %v98
    %v889 = vmax.f32 %v885, 0.0
    %v890 = vmax.f32 %v886, 0.0
    %v891 = vmax.f32 %v887, 0.0
    %v892 = vmax.f32 %v888, 0.0
    %v893 = vpack.c.bf16 %v890, %v889
    %v894 = vpack.c.bf16 %v892, %v891
    %v895 = vld [vmem:[#allocation9] sm:$0xf]
    %v896 = vld [vmem:[#allocation9 + $0x4] sm:$0xf]
    %v897 = vld [vmem:[#allocation9 + $0x8] sm:$0xf]
    %v898 = vld [vmem:[#allocation9 + $0xc] sm:$0xf]
    %v899 = vld [vmem:[#allocation9 + $0x10] sm:$0xf]
    %v900 = vld [vmem:[#allocation9 + $0x14] sm:$0xf]
    %v901 = vld [vmem:[#allocation9 + $0x18] sm:$0xf]
    %v902 = vld [vmem:[#allocation9 + $0x1c] sm:$0xf]
    %v903 = vld [vmem:[#allocation9 + $0x20] sm:$0xf]
    %v904 = vld [vmem:[#allocation9 + $0x24] sm:$0xf]
    %v905 = vld [vmem:[#allocation9 + $0x28] sm:$0xf]
    %v906 = vld [vmem:[#allocation9 + $0x2c] sm:$0xf]
    %v907 = vld [vmem:[#allocation9 + $0x30] sm:$0xf]
    %v908 = vld [vmem:[#allocation9 + $0x34] sm:$0xf]
    %v909 = vld [vmem:[#allocation9 + $0x38] sm:$0xf]
    %v910 = vld [vmem:[#allocation9 + $0x3c] sm:$0xf]
    %v911 = vld [vmem:[%s4] sm:$0x1]
    %v913 = vperm.slane %v911, 0
    %v931 = vunpack.c.l.b16 %v895
    %v932 = vunpack.c.l.b16 %v896
    %v933 = vunpack.c.l.b16 %v897
    %v934 = vunpack.c.l.b16 %v898
    %v935 = vunpack.c.l.b16 %v899
    %v936 = vunpack.c.l.b16 %v900
    %v937 = vunpack.c.l.b16 %v901
    %v938 = vunpack.c.l.b16 %v902
    %v939 = vunpack.c.l.b16 %v903
    %v940 = vunpack.c.l.b16 %v904
    %v941 = vunpack.c.l.b16 %v905
    %v942 = vunpack.c.l.b16 %v906
    %v943 = vunpack.c.l.b16 %v907
    %v944 = vunpack.c.l.b16 %v908
    %v945 = vunpack.c.l.b16 %v909
    %v946 = vunpack.c.l.b16 %v910
    %v947 = vpack.c.b16 %v932, %v931
    %v948 = vpack.c.b16 %v934, %v933
    %v949 = vpack.c.b16 %v936, %v935
    %v950 = vpack.c.b16 %v938, %v937
    %v951 = vpack.c.b16 %v940, %v939
    %v952 = vpack.c.b16 %v942, %v941
    %v953 = vpack.c.b16 %v944, %v943
    %v954 = vpack.c.b16 %v946, %v945
    %963 = vmatpush.bf16.msra.mxu0 %v954
    %964 = vmatpush.bf16.msra.mxu0 %v953
    %965 = vmatpush.bf16.msra.mxu0 %v952
    %966 = vmatpush.bf16.msra.mxu0 %v951
    %967 = vmatpush.bf16.msra.mxu0 %v950
    %968 = vmatpush.bf16.msra.mxu0 %v949
    %969 = vmatpush.bf16.msra.mxu0 %v948
    %970 = vmatpush.bf16.msra.mxu0 %v947
    %971 = vmatmul.bf16.gmra.mxu0 %v893
    %v972 = vpop.f32.mrf.mxu0
    %v973 = vadd.f32 %v913, %v972
    %v974 = vpop.f32.mrf.mxu0
    %v975 = vadd.f32 %v913, %v974
    %976 = vmatmul.bf16.gmra.mxu0 %v894
    %v977 = vpop.f32.mrf.mxu0
    %v978 = vadd.f32 %v913, %v977
    %v979 = vpop.f32.mrf.mxu0
    %v980 = vadd.f32 %v913, %v979
    %981 = vdwg.mxu0
    %982 = vst [vmem:[#allocation11] sm:$0xff] %v973
    %983 = vst [vmem:[#allocation11 + $0x8] sm:$0xff] %v975
    %984 = vst [vmem:[#allocation11 + $0x10] sm:$0xff] %v978
    %985 = vst [vmem:[#allocation11 + $0x18] sm:$0xff] %v980
    // Predicated region
    $region46: #{tpu_custom_call.1} parent=1 // pred_check
      _
    $region47: #{tpu_custom_call.1} parent=1 // pred_check_branch
      %987 = sbr.rel (0) target = $region49
    $region48: #{tpu_custom_call.1} parent=1 // pred_region
      %989 = vsyncadd [#allocation5], 0
      %s990 = sshll.u32 [#allocation11], 4
      %s991 = int_to_ptr.vmem [resolvable:$true] %s990
      %s992 = sshll.u32 %s7, 4
      %s993 = int_to_ptr.hbm [resolvable:$true] %s992
      %998 = dma.vmem_to_hbm [thread:$0]  %s991, 512, %s993, [#allocation5], 128, 128, 8
    $region49: #{tpu_custom_call.1} parent=1 // pred_fallthru
      _
    // Predicated region
    $region50: #{tpu_custom_call.1} parent=1 // pred_check
      _
    $region51: #{tpu_custom_call.1} parent=1 // pred_check_branch
      %1000 = sbr.rel (0) target = $region53
    $region52: #{tpu_custom_call.1} parent=1 // pred_region
      %1002 = dma.done [#allocation5], 512
    $region53: #{tpu_custom_call.1} parent=1 // pred_fallthru
      _
    %1003 = vsyncpa [#allocation4], 1
    %1004 = vsyncpa [#allocation7], 1
    %1005 = vsyncpa [#allocation10], 1
    %1006 = vsyncpa [#allocation5], 1

</llo_original>
